<compile_context>
chip_gen: v7x
topology: tpu7x:2x2x1
jax: 0.10.0
libtpu: 0.0.40
codegen_flags: <defaults>
</compile_context>

<pallas_src>
import functools

import jax
import jax.numpy as jnp
import numpy as np
from jax import lax
from jax.experimental import pallas as pl
from jax.experimental.pallas import tpu as pltpu


def _round_up(x, m):
    return (x + m - 1) // m * m


# ---------------- stage 1: fused projection (all heads) + padded per-node score vectors ----------------
def _proj_kernel(x_ref, wT_ref, aP_ref, h_ref, s_ref):
    # x_ref: (tm, Fin), wT_ref: (Fin, HF), aP_ref: (HF, SPAD) block-diagonal `a`, zero padded.
    h = jnp.dot(x_ref[...], wT_ref[...], preferred_element_type=jnp.float32)   # (tm, HF)
    h_ref[...] = h
    # s[:, hd]     = h_head @ a_src_head      (src scores)
    # s[:, H + hd] = h_head @ a_dst_head      (dst scores)
    # columns >= 2H are zero padding so this is one dense 128-lane store (no masked vst).
    s_ref[...] = jnp.dot(h, aP_ref[...], preferred_element_type=jnp.float32)   # (tm, SPAD)


# ---------------- stage 2: column-tiled attention for ALL heads ----------------
def _attn_kernel(adj_ref, h_ref, rL_ref, rR_ref, cB_ref, out_ref, *,
                 alpha, activation, nheads, fhead):
    # adj_ref: (1, N, tn) bf16/f32    h_ref: (1, tn, HF) f32
    # rL/rR:   (1, N, H) f32 (only top-half rows used)    cB_ref: (1, H, tn) f32
    # out_ref: (1, N, HF) f32 persistent accumulator (block index constant along column axis)
    col = pl.program_id(1)
    ncol = pl.num_programs(1)
    N = adj_ref.shape[1]
    tn = adj_ref.shape[2]
    half = N // 2

    adj = adj_ref[0].astype(jnp.float32)              # exact for 0/1 adjacency
    adj_pos = adj > 0
    neg = jnp.float32(-9e15)

    # Head-invariant masks, hoisted out of the head loop (global column index of this tile).
    c0 = col * tn
    row_is_top = lax.broadcasted_iota(jnp.int32, (N, 1), 0) < half
    col_is_left = (c0 + lax.broadcasted_iota(jnp.int32, (1, tn), 1)) < half

    rL = rL_ref[0]        # (N, H)
    rR = rR_ref[0]        # (N, H)
    cB = cB_ref[0]        # (H, tn)
    h_cols = h_ref[0]     # (tn, HF)

    @pl.when(col == 0)
    def _():
        out_ref[...] = jnp.zeros_like(out_ref)

    # Static head loop: each head's tile result is consumed immediately by the accumulator
    # store, so no H-way partials stay live and there is no in-kernel concatenate.
    for hd in range(nheads):
        left = rL[:, hd:hd + 1]                       # (N, 1)
        right = rR[:, hd:hd + 1]                      # (N, 1)
        bottom = cB[hd:hd + 1, :]                     # (1, tn)
        # e reproduces  self.a(a_input).squeeze(3)  for torch's dim=1 cat/view pairing.
        e = jnp.where(row_is_top, jnp.where(col_is_left, left, right), bottom)
        e = jnp.where(e > 0, e, alpha * e)            # LeakyReLU(alpha)

        # Masked entries become (-9e15)*0 = 0 and leak exp(0-m) into the denominator;
        # this exactly mirrors the torch module (do not "fix" on one side only).
        att = jnp.where(adj_pos, e, neg) * adj
        # F.softmax(attention, dim=1): per-column softmax; rows are un-tiled so it's exact.
        m = jnp.max(att, axis=0, keepdims=True)
        p = jnp.exp(att - m)
        denom = jnp.sum(p, axis=0, keepdims=True)
        att = p * pl.reciprocal(denom, approx=False)  # full precision to preserve parity

        hp = jnp.dot(att, h_cols[:, hd * fhead:(hd + 1) * fhead],
                     preferred_element_type=jnp.float32)          # (N, fhead)
        out_ref[0, :, hd * fhead:(hd + 1) * fhead] += hp

    if activation:                                    # F.elu, alpha=1, applied once at the end
        @pl.when(col == ncol - 1)
        def _():
            y = out_ref[...]
            out_ref[...] = jnp.where(y > 0, y, jnp.exp(jnp.minimum(y, 0.0)) - 1.0)


def _pick_col_tile(N):
    if N <= 512:
        return N
    for t in (512, 256, 128):
        if N % t == 0:
            return t
    return N   # TODO(synk): ragged N (not a multiple of 128) would need column padding/masking


# ----------------------------- wrapper -----------------------------

def gat_layer_pallas(x, adj, params, *, alpha, activation, col_tile=None,
                     assume_binary_adj=True):
    """GATLayer forward. x: (B,N,Fin) f32, adj: (B,N,N), params: [(W (F,Fin), a_w (1,2F)), ...]."""
    B, N, Fin = x.shape
    H = len(params)
    Fh = params[0][0].shape[0]
    HF = H * Fh
    # TODO(synk): the broadcast decomposition of torch's dim=1 cat/view pairing assumes even N;
    #             odd N would need the original tile/cat construction.
    assert N % 2 == 0

    adj = adj.astype(jnp.float32)                      # adj.type(torch.FloatTensor)

    # Packed parameters: stacked projection W_allT (Fin, HF) and block-diagonal attention
    # matrix A zero-padded to SPAD lanes so stage 1's score output store is lane-dense.
    W_allT = jnp.concatenate([W.T for (W, _) in params], axis=1)
    SPAD = max(128, _round_up(2 * H, 128))
    A = jnp.zeros((HF, SPAD), jnp.float32)
    for hd, (_, a_w) in enumerate(params):
        A = A.at[hd * Fh:(hd + 1) * Fh, hd].set(a_w[0, :Fh])
        A = A.at[hd * Fh:(hd + 1) * Fh, H + hd].set(a_w[0, Fh:])

    # ---- stage 1: one MXU pass over all B*N rows, all heads + attention vectors fused ----
    M = B * N
    tm = 1024 if M >= 1024 else (512 if M >= 512 else _round_up(M, 8))
    Mp = _round_up(M, tm)
    x_flat = x.reshape(M, Fin)
    if Mp != M:
        x_flat = jnp.pad(x_flat, ((0, Mp - M), (0, 0)))

    h_flat, s_flat = pl.pallas_call(
        _proj_kernel,
        out_shape=(jax.ShapeDtypeStruct((Mp, HF), jnp.float32),
                   jax.ShapeDtypeStruct((Mp, SPAD), jnp.float32)),
        grid=(Mp // tm,),
        in_specs=[pl.BlockSpec((tm, Fin), lambda i: (i, 0)),
                  pl.BlockSpec((Fin, HF), lambda i: (0, 0)),
                  pl.BlockSpec((HF, SPAD), lambda i: (0, 0))],
        out_specs=(pl.BlockSpec((tm, HF), lambda i: (i, 0)),
                   pl.BlockSpec((tm, SPAD), lambda i: (i, 0))),
        compiler_params=pltpu.CompilerParams(dimension_semantics=("parallel",)),
    )(x_flat, W_allT, A)

    h_all = h_flat[:M].reshape(B, N, HF)
    s = s_flat[:M, :2 * H].reshape(B, N, 2 * H)

    # ---- O(B*N*H) glue (negligible): even/odd reindexing of the score vectors encoding
    #      torch's dim=1 cat/view pairing. No O(N^2) tensor is built here. ----
    s0, s1 = s[..., :H], s[..., H:]
    t = s0 + s1
    te = t[:, 0::2, :]                                   # (B, N/2, H)  top rows, left cols
    to = t[:, 1::2, :]                                   # (B, N/2, H)  top rows, right cols
    w = s0[:, 0::2, :] + s1[:, 1::2, :]                  # (B, N/2, H)  bottom rows, per column
    zeros = jnp.zeros_like(te)
    rL = jnp.concatenate([te, zeros], axis=1)            # (B, N, H) (bottom-half rows unused)
    rR = jnp.concatenate([to, zeros], axis=1)            # (B, N, H)
    cB = jnp.transpose(jnp.concatenate([w, w], axis=1), (0, 2, 1))   # (B, H, N)

    # ---- stage 2: column-tiled fused attention, accumulated into the (N, HF) output block ----
    tn = col_tile if col_tile is not None else _pick_col_tile(N)
    assert N % tn == 0
    C = N // tn
    # adj is the dominant HBM stream of stage 2: ship it compressed (bf16 is exact for 0/1).
    adj_s2 = adj.astype(jnp.bfloat16) if assume_binary_adj else adj

    kernel = functools.partial(_attn_kernel, alpha=alpha, activation=activation,
                               nheads=H, fhead=Fh)
    # TODO(synk): with B == 1 on v7x the single "parallel" axis leaves one TensorCore idle;
    #             exposing row tiles would need a two-pass softmax over the row axis.
    out = pl.pallas_call(
        kernel,
        out_shape=jax.ShapeDtypeStruct((B, N, HF), jnp.float32),
        grid=(B, C),
        in_specs=[pl.BlockSpec((1, N, tn), lambda b, c: (b, 0, c)),
                  pl.BlockSpec((1, tn, HF), lambda b, c: (b, c, 0)),
                  pl.BlockSpec((1, N, H), lambda b, c: (b, 0, 0)),
                  pl.BlockSpec((1, N, H), lambda b, c: (b, 0, 0)),
                  pl.BlockSpec((1, H, tn), lambda b, c: (b, 0, c))],
        out_specs=pl.BlockSpec((1, N, HF), lambda b, c: (b, 0, 0)),
        compiler_params=pltpu.CompilerParams(
            dimension_semantics=("parallel", "arbitrary"),
            vmem_limit_bytes=32 * 1024 * 1024),
    )(adj_s2, h_all, rL, rR, cB)
    return out


# ------------------ pure-JAX reference (exact mirror of the torch ops) ------------------

def gat_head_ref(x, adj, W, a_w, *, alpha, activation):
    h = jnp.einsum('bnf,of->bno', x, W)
    B, N, _ = adj.shape
    Fh = h.shape[-1]
    t1 = jnp.tile(h, (1, 1, N)).reshape(B, N * N, Fh)
    t2 = jnp.tile(h, (1, N, 1))
    a_input = jnp.concatenate([t1, t2], axis=1).reshape(B, N, N, 2 * Fh)
    e = jnp.einsum('bijk,k->bij', a_input, a_w[0])
    e = jnp.where(e > 0, e, alpha * e)
    att = jnp.where(adj > 0, e, jnp.float32(-9e15))
    att = att * adj
    att = jax.nn.softmax(att, axis=1)
    hp = jnp.einsum('bij,bjf->bif', att, h)
    if activation:
        hp = jnp.where(hp > 0, hp, jnp.exp(jnp.minimum(hp, 0.0)) - 1.0)
    return hp


def gat_layer_ref(x, adj, params, *, alpha, activation):
    adj = adj.astype(jnp.float32)
    return jnp.concatenate(
        [gat_head_ref(x, adj, W, a_w, alpha=alpha, activation=activation) for (W, a_w) in params],
        axis=2)


# ----------------------------- main -----------------------------

def _make_params(key, Fin, Fh, H):
    keys = jax.random.split(key, 2 * H)
    params = []
    for hd in range(H):
        W = jax.random.normal(keys[2 * hd], (Fh, Fin), dtype=jnp.float32) * (1.0 / np.sqrt(Fin))
        a_w = jax.random.normal(keys[2 * hd + 1], (1, 2 * Fh), dtype=jnp.float32) * (1.0 / np.sqrt(2 * Fh))
        params.append((W, a_w))
    return params


def _run_case(key, *, B, N, Fin, out_features, nheads, alpha, activation, col_tile=None):
    Fh = out_features // nheads
    kx, kadj, kp = jax.random.split(key, 3)
    x = jax.random.normal(kx, (B, N, Fin), dtype=jnp.float32)
    adj = (jax.random.uniform(kadj, (B, N, N)) > 0.5).astype(jnp.float32)
    adj = jnp.maximum(adj, jnp.eye(N, dtype=jnp.float32)[None])   # self-loops
    params = _make_params(kp, Fin, Fh, nheads)

    fwd = jax.jit(functools.partial(gat_layer_pallas, alpha=alpha, activation=activation,
                                    col_tile=col_tile))
    y = jax.block_until_ready(fwd(x, adj, params))
    y_ref = gat_layer_ref(x, adj, params, alpha=alpha, activation=activation)
    np.testing.assert_allclose(np.asarray(y), np.asarray(y_ref), rtol=2e-5, atol=2e-5)
    assert y.shape == (B, N, out_features)


if __name__ == "__main__":
    key = jax.random.PRNGKey(0)
    k1, k2 = jax.random.split(key)
    # Small case matching the module defaults.
    _run_case(k1, B=2, N=8, Fin=16, out_features=16, nheads=2, alpha=0.2, activation=True)
    # Larger-N / 4-head / multi-column-tile regression of the e-decomposition and accumulator.
    _run_case(k2, B=1, N=256, Fin=16, out_features=32, nheads=4, alpha=0.2,
              activation=False, col_tile=128)
    print("KERNEL_OK")
</pallas_src>

<mosaic_0001>
module attributes {stable_mosaic.version = 11 : i64} {
  func.func @_proj_kernel(%arg0: i32, %arg1: memref<16x16xf32, #tpu.memory_space<vmem>>, %arg2: memref<16x16xf32, #tpu.memory_space<vmem>>, %arg3: memref<16x128xf32, #tpu.memory_space<vmem>>, %arg4: memref<16x16xf32, #tpu.memory_space<vmem>>, %arg5: memref<16x128xf32, #tpu.memory_space<vmem>>) attributes {dimension_semantics = [#tpu.dimension_semantics<parallel>], iteration_bounds = array<i64: 1>, scalar_prefetch = 0 : i64, scratch_operands = 0 : i64, tpu.core_type = #tpu.core_type<tc>, window_params = [{transform_indices = @transform_0, window_bounds = array<i64: 16, 16>}, {pipeline_mode = #tpu.pipeline_mode<synchronous>, transform_indices = @transform_1, window_bounds = array<i64: 16, 16>}, {pipeline_mode = #tpu.pipeline_mode<synchronous>, transform_indices = @transform_2, window_bounds = array<i64: 16, 128>}, {transform_indices = @transform_3, window_bounds = array<i64: 16, 16>}, {transform_indices = @transform_4, window_bounds = array<i64: 16, 128>}]} {
    %c0 = arith.constant 0 : index
    %c0_0 = arith.constant 0 : index
    %0 = vector.load %arg1[%c0, %c0_0] : memref<16x16xf32, #tpu.memory_space<vmem>>, vector<16x16xf32>
    %c0_1 = arith.constant 0 : index
    %c0_2 = arith.constant 0 : index
    %1 = vector.load %arg2[%c0_1, %c0_2] : memref<16x16xf32, #tpu.memory_space<vmem>>, vector<16x16xf32>
    %cst = arith.constant dense<0.000000e+00> : vector<16x16xf32>
    %2 = tpu.matmul %0, %1, %cst {dimension_numbers = #tpu.dot_dimension_numbers<[1], [0], [0], [1], [0, 0, 1, 1], [], []>} : vector<16x16xf32>, vector<16x16xf32>, vector<16x16xf32> -> vector<16x16xf32>
    %c0_3 = arith.constant 0 : index
    %c0_4 = arith.constant 0 : index
    %3 = vector.load %arg4[%c0_3, %c0_4] : memref<16x16xf32, #tpu.memory_space<vmem>>, vector<16x16xf32>
    tpu.vector_store %arg4[%c0_3, %c0_4], %2 {strides = array<i32>} : memref<16x16xf32, #tpu.memory_space<vmem>>, vector<16x16xf32>,
    %c0_5 = arith.constant 0 : index
    %c0_6 = arith.constant 0 : index
    %4 = vector.load %arg3[%c0_5, %c0_6] : memref<16x128xf32, #tpu.memory_space<vmem>>, vector<16x128xf32>
    %cst_7 = arith.constant dense<0.000000e+00> : vector<16x128xf32>
    %5 = tpu.matmul %2, %4, %cst_7 {dimension_numbers = #tpu.dot_dimension_numbers<[1], [0], [0], [1], [0, 0, 1, 1], [], []>} : vector<16x16xf32>, vector<16x128xf32>, vector<16x128xf32> -> vector<16x128xf32>
    %c0_8 = arith.constant 0 : index
    %c0_9 = arith.constant 0 : index
    %6 = vector.load %arg5[%c0_8, %c0_9] : memref<16x128xf32, #tpu.memory_space<vmem>>, vector<16x128xf32>
    tpu.vector_store %arg5[%c0_8, %c0_9], %5 {strides = array<i32>} : memref<16x128xf32, #tpu.memory_space<vmem>>, vector<16x128xf32>,
    return
  }
  func.func @transform_0(%arg0: i32) -> (i32, i32) {
    %c0_i32 = arith.constant 0 : i32
    %c0_i32_0 = arith.constant 0 : i32
    return %arg0, %c0_i32 : i32, i32
  }
  func.func @transform_1(%arg0: i32) -> (i32, i32) {
    %c0_i32 = arith.constant 0 : i32
    %c0_i32_0 = arith.constant 0 : i32
    %c0_i32_1 = arith.constant 0 : i32
    return %c0_i32, %c0_i32_0 : i32, i32
  }
  func.func @transform_2(%arg0: i32) -> (i32, i32) {
    %c0_i32 = arith.constant 0 : i32
    %c0_i32_0 = arith.constant 0 : i32
    %c0_i32_1 = arith.constant 0 : i32
    return %c0_i32, %c0_i32_0 : i32, i32
  }
  func.func @transform_3(%arg0: i32) -> (i32, i32) {
    %c0_i32 = arith.constant 0 : i32
    %c0_i32_0 = arith.constant 0 : i32
    return %arg0, %c0_i32 : i32, i32
  }
  func.func @transform_4(%arg0: i32) -> (i32, i32) {
    %c0_i32 = arith.constant 0 : i32
    %c0_i32_0 = arith.constant 0 : i32
    return %arg0, %c0_i32 : i32, i32
  }
}

module attributes {stable_mosaic.version = 11 : i64} {
  func.func @_attn_kernel(%arg0: i32, %arg1: i32, %arg2: memref<1x8x8xbf16, #tpu.memory_space<vmem>>, %arg3: memref<1x8x16xf32, #tpu.memory_space<vmem>>, %arg4: memref<1x8x2xf32, #tpu.memory_space<vmem>>, %arg5: memref<1x8x2xf32, #tpu.memory_space<vmem>>, %arg6: memref<1x2x8xf32, #tpu.memory_space<vmem>>, %arg7: memref<1x8x16xf32, #tpu.memory_space<vmem>>) attributes {dimension_semantics = [#tpu.dimension_semantics<parallel>, #tpu.dimension_semantics<arbitrary>], iteration_bounds = array<i64: 2, 1>, scalar_prefetch = 0 : i64, scratch_operands = 0 : i64, tpu.core_type = #tpu.core_type<tc>, window_params = [{transform_indices = @transform_0, window_bounds = array<i64: 1, 8, 8>}, {transform_indices = @transform_1, window_bounds = array<i64: 1, 8, 16>}, {transform_indices = @transform_2, window_bounds = array<i64: 1, 8, 2>}, {transform_indices = @transform_3, window_bounds = array<i64: 1, 8, 2>}, {transform_indices = @transform_4, window_bounds = array<i64: 1, 2, 8>}, {transform_indices = @transform_5, window_bounds = array<i64: 1, 8, 16>}]} {
    %c0 = arith.constant 0 : index
    %c0_0 = arith.constant 0 : index
    %c0_1 = arith.constant 0 : index
    %0 = vector.load %arg2[%c0, %c0_0, %c0_1] : memref<1x8x8xbf16, #tpu.memory_space<vmem>>, vector<1x8x8xbf16>
    %1 = vector.shape_cast %0 : vector<1x8x8xbf16> to vector<8x8xbf16>
    %2 = arith.extf %1 : vector<8x8xbf16> to vector<8x8xf32>
    %cst = arith.constant 0.000000e+00 : f32
    %3 = vector.broadcast %cst : f32 to vector<8x8xf32>
    %4 = arith.cmpf ogt, %2, %3 : vector<8x8xf32>
    %c8_i32 = arith.constant 8 : i32
    %5 = arith.muli %arg1, %c8_i32 : i32
    %6 = tpu.iota {dimensions = array<i32: 0>} : vector<8x1xi32>
    %c4_i32 = arith.constant 4 : i32
    %7 = vector.broadcast %c4_i32 : i32 to vector<8x1xi32>
    %8 = arith.cmpi slt, %6, %7 : vector<8x1xi32>
    %9 = tpu.iota {dimensions = array<i32: 1>} : vector<1x8xi32>
    %10 = vector.broadcast %5 : i32 to vector<1x8xi32>
    %11 = arith.addi %10, %9 : vector<1x8xi32>
    %c4_i32_2 = arith.constant 4 : i32
    %12 = vector.broadcast %c4_i32_2 : i32 to vector<1x8xi32>
    %13 = arith.cmpi slt, %11, %12 : vector<1x8xi32>
    %c0_3 = arith.constant 0 : index
    %c0_4 = arith.constant 0 : index
    %c0_5 = arith.constant 0 : index
    %14 = vector.load %arg4[%c0_3, %c0_4, %c0_5] : memref<1x8x2xf32, #tpu.memory_space<vmem>>, vector<1x8x2xf32>
    %15 = vector.shape_cast %14 : vector<1x8x2xf32> to vector<8x2xf32>
    %c0_6 = arith.constant 0 : index
    %c0_7 = arith.constant 0 : index
    %c0_8 = arith.constant 0 : index
    %16 = vector.load %arg5[%c0_6, %c0_7, %c0_8] : memref<1x8x2xf32, #tpu.memory_space<vmem>>, vector<1x8x2xf32>
    %17 = vector.shape_cast %16 : vector<1x8x2xf32> to vector<8x2xf32>
    %c0_9 = arith.constant 0 : index
    %c0_10 = arith.constant 0 : index
    %c0_11 = arith.constant 0 : index
    %18 = vector.load %arg6[%c0_9, %c0_10, %c0_11] : memref<1x2x8xf32, #tpu.memory_space<vmem>>, vector<1x2x8xf32>
    %19 = vector.shape_cast %18 : vector<1x2x8xf32> to vector<2x8xf32>
    %c0_12 = arith.constant 0 : index
    %c0_13 = arith.constant 0 : index
    %c0_14 = arith.constant 0 : index
    %20 = vector.load %arg3[%c0_12, %c0_13, %c0_14] : memref<1x8x16xf32, #tpu.memory_space<vmem>>, vector<1x8x16xf32>
    %21 = vector.shape_cast %20 : vector<1x8x16xf32> to vector<8x16xf32>
    %c0_i32 = arith.constant 0 : i32
    %22 = arith.cmpi eq, %arg1, %c0_i32 : i32
    %23 = arith.extui %22 : i1 to i32
    %c0_i32_15 = arith.constant 0 : i32
    %24 = arith.cmpi ne, %23, %c0_i32_15 : i32
    scf.if %24 {
      %cst_41 = arith.constant 0.000000e+00 : f32
      %110 = vector.broadcast %cst_41 : f32 to vector<1x8x16xf32>
      %c0_42 = arith.constant 0 : index
      %c0_43 = arith.constant 0 : index
      %c0_44 = arith.constant 0 : index
      %111 = vector.load %arg7[%c0_42, %c0_43, %c0_44] : memref<1x8x16xf32, #tpu.memory_space<vmem>>, vector<1x8x16xf32>
      tpu.vector_store %arg7[%c0_42, %c0_43, %c0_44], %110 {strides = array<i32>} : memref<1x8x16xf32, #tpu.memory_space<vmem>>, vector<1x8x16xf32>,
    } else {
    }
    %25 = vector.extract_strided_slice %15 {offsets = [0, 0], sizes = [8, 1], strides = [1, 1]} : vector<8x2xf32> to vector<8x1xf32>
    %26 = vector.extract_strided_slice %17 {offsets = [0, 0], sizes = [8, 1], strides = [1, 1]} : vector<8x2xf32> to vector<8x1xf32>
    %27 = vector.extract_strided_slice %19 {offsets = [0, 0], sizes = [1, 8], strides = [1, 1]} : vector<2x8xf32> to vector<1x8xf32>
    %28 = vector.shape_cast %13 : vector<1x8xi1> to vector<1x8xi1>
    %29 = vector.broadcast %28 : vector<1x8xi1> to vector<8x8xi1>
    %30 = vector.shape_cast %25 : vector<8x1xf32> to vector<8x1xf32>
    %31 = vector.broadcast %30 : vector<8x1xf32> to vector<8x8xf32>
    %32 = vector.shape_cast %26 : vector<8x1xf32> to vector<8x1xf32>
    %33 = vector.broadcast %32 : vector<8x1xf32> to vector<8x8xf32>
    %34 = arith.select %29, %31, %33 : vector<8x8xi1>, vector<8x8xf32>
    %35 = vector.shape_cast %8 : vector<8x1xi1> to vector<8x1xi1>
    %36 = vector.broadcast %35 : vector<8x1xi1> to vector<8x8xi1>
    %37 = vector.shape_cast %27 : vector<1x8xf32> to vector<1x8xf32>
    %38 = vector.broadcast %37 : vector<1x8xf32> to vector<8x8xf32>
    %39 = arith.select %36, %34, %38 : vector<8x8xi1>, vector<8x8xf32>
    %cst_16 = arith.constant 0.000000e+00 : f32
    %40 = vector.broadcast %cst_16 : f32 to vector<8x8xf32>
    %41 = arith.cmpf ogt, %39, %40 : vector<8x8xf32>
    %cst_17 = arith.constant 2.000000e-01 : f32
    %42 = vector.broadcast %cst_17 : f32 to vector<8x8xf32>
    %43 = arith.mulf %42, %39 : vector<8x8xf32>
    %44 = arith.select %41, %39, %43 : vector<8x8xi1>, vector<8x8xf32>
    %cst_18 = arith.constant -9.000000e+15 : f32
    %45 = vector.broadcast %cst_18 : f32 to vector<8x8xf32>
    %46 = arith.select %4, %44, %45 : vector<8x8xi1>, vector<8x8xf32>
    %47 = arith.mulf %46, %2 : vector<8x8xf32>
    %cst_19 = arith.constant dense<0xFF800000> : vector<8xf32>
    %48 = vector.multi_reduction <maximumf>, %47, %cst_19 [0] : vector<8x8xf32> to vector<8xf32>
    %49 = vector.shape_cast %48 : vector<8xf32> to vector<1x8xf32>
    %50 = vector.broadcast %49 : vector<1x8xf32> to vector<8x8xf32>
    %51 = arith.subf %47, %50 : vector<8x8xf32>
    %52 = math.exp %51 : vector<8x8xf32>
    %cst_20 = arith.constant dense<0.000000e+00> : vector<8xf32>
    %53 = vector.multi_reduction <add>, %52, %cst_20 [0] : vector<8x8xf32> to vector<8xf32>
    %54 = vector.shape_cast %53 : vector<8xf32> to vector<1x8xf32>
    %55 = tpu.reciprocal %54 : vector<1x8xf32> -> vector<1x8xf32>
    %56 = vector.broadcast %55 : vector<1x8xf32> to vector<8x8xf32>
    %57 = arith.mulf %52, %56 : vector<8x8xf32>
    %58 = vector.extract_strided_slice %21 {offsets = [0, 0], sizes = [8, 8], strides = [1, 1]} : vector<8x16xf32> to vector<8x8xf32>
    %cst_21 = arith.constant dense<0.000000e+00> : vector<8x8xf32>
    %59 = tpu.matmul %57, %58, %cst_21 {dimension_numbers = #tpu.dot_dimension_numbers<[1], [0], [0], [1], [0, 0, 1, 1], [], []>} : vector<8x8xf32>, vector<8x8xf32>, vector<8x8xf32> -> vector<8x8xf32>
    %c0_22 = arith.constant 0 : index
    %c0_23 = arith.constant 0 : index
    %c0_24 = arith.constant 0 : index
    %60 = vector.load %arg7[%c0_22, %c0_23, %c0_24] : memref<1x8x16xf32, #tpu.memory_space<vmem>>, vector<1x8x8xf32>
    %61 = vector.shape_cast %60 : vector<1x8x8xf32> to vector<8x8xf32>
    %62 = arith.addf %61, %59 : vector<8x8xf32>
    %c0_25 = arith.constant 0 : index
    %c0_26 = arith.constant 0 : index
    %c0_27 = arith.constant 0 : index
    %63 = vector.load %arg7[%c0_25, %c0_26, %c0_27] : memref<1x8x16xf32, #tpu.memory_space<vmem>>, vector<1x8x8xf32>
    %64 = vector.shape_cast %63 : vector<1x8x8xf32> to vector<8x8xf32>
    %65 = vector.shape_cast %62 : vector<8x8xf32> to vector<1x8x8xf32>
    tpu.vector_store %arg7[%c0_25, %c0_26, %c0_27], %65 {strides = array<i32>} : memref<1x8x16xf32, #tpu.memory_space<vmem>>, vector<1x8x8xf32>,
    %66 = vector.extract_strided_slice %15 {offsets = [0, 1], sizes = [8, 1], strides = [1, 1]} : vector<8x2xf32> to vector<8x1xf32>
    %67 = vector.extract_strided_slice %17 {offsets = [0, 1], sizes = [8, 1], strides = [1, 1]} : vector<8x2xf32> to vector<8x1xf32>
    %68 = vector.extract_strided_slice %19 {offsets = [1, 0], sizes = [1, 8], strides = [1, 1]} : vector<2x8xf32> to vector<1x8xf32>
    %69 = vector.shape_cast %13 : vector<1x8xi1> to vector<1x8xi1>
    %70 = vector.broadcast %69 : vector<1x8xi1> to vector<8x8xi1>
    %71 = vector.shape_cast %66 : vector<8x1xf32> to vector<8x1xf32>
    %72 = vector.broadcast %71 : vector<8x1xf32> to vector<8x8xf32>
    %73 = vector.shape_cast %67 : vector<8x1xf32> to vector<8x1xf32>
    %74 = vector.broadcast %73 : vector<8x1xf32> to vector<8x8xf32>
    %75 = arith.select %70, %72, %74 : vector<8x8xi1>, vector<8x8xf32>
    %76 = vector.shape_cast %8 : vector<8x1xi1> to vector<8x1xi1>
    %77 = vector.broadcast %76 : vector<8x1xi1> to vector<8x8xi1>
    %78 = vector.shape_cast %68 : vector<1x8xf32> to vector<1x8xf32>
    %79 = vector.broadcast %78 : vector<1x8xf32> to vector<8x8xf32>
    %80 = arith.select %77, %75, %79 : vector<8x8xi1>, vector<8x8xf32>
    %cst_28 = arith.constant 0.000000e+00 : f32
    %81 = vector.broadcast %cst_28 : f32 to vector<8x8xf32>
    %82 = arith.cmpf ogt, %80, %81 : vector<8x8xf32>
    %cst_29 = arith.constant 2.000000e-01 : f32
    %83 = vector.broadcast %cst_29 : f32 to vector<8x8xf32>
    %84 = arith.mulf %83, %80 : vector<8x8xf32>
    %85 = arith.select %82, %80, %84 : vector<8x8xi1>, vector<8x8xf32>
    %cst_30 = arith.constant -9.000000e+15 : f32
    %86 = vector.broadcast %cst_30 : f32 to vector<8x8xf32>
    %87 = arith.select %4, %85, %86 : vector<8x8xi1>, vector<8x8xf32>
    %88 = arith.mulf %87, %2 : vector<8x8xf32>
    %cst_31 = arith.constant dense<0xFF800000> : vector<8xf32>
    %89 = vector.multi_reduction <maximumf>, %88, %cst_31 [0] : vector<8x8xf32> to vector<8xf32>
    %90 = vector.shape_cast %89 : vector<8xf32> to vector<1x8xf32>
    %91 = vector.broadcast %90 : vector<1x8xf32> to vector<8x8xf32>
    %92 = arith.subf %88, %91 : vector<8x8xf32>
    %93 = math.exp %92 : vector<8x8xf32>
    %cst_32 = arith.constant dense<0.000000e+00> : vector<8xf32>
    %94 = vector.multi_reduction <add>, %93, %cst_32 [0] : vector<8x8xf32> to vector<8xf32>
    %95 = vector.shape_cast %94 : vector<8xf32> to vector<1x8xf32>
    %96 = tpu.reciprocal %95 : vector<1x8xf32> -> vector<1x8xf32>
    %97 = vector.broadcast %96 : vector<1x8xf32> to vector<8x8xf32>
    %98 = arith.mulf %93, %97 : vector<8x8xf32>
    %99 = vector.extract_strided_slice %21 {offsets = [0, 8], sizes = [8, 8], strides = [1, 1]} : vector<8x16xf32> to vector<8x8xf32>
    %cst_33 = arith.constant dense<0.000000e+00> : vector<8x8xf32>
    %100 = tpu.matmul %98, %99, %cst_33 {dimension_numbers = #tpu.dot_dimension_numbers<[1], [0], [0], [1], [0, 0, 1, 1], [], []>} : vector<8x8xf32>, vector<8x8xf32>, vector<8x8xf32> -> vector<8x8xf32>
    %c0_34 = arith.constant 0 : index
    %c0_35 = arith.constant 0 : index
    %c8 = arith.constant 8 : index
    %101 = vector.load %arg7[%c0_34, %c0_35, %c8] : memref<1x8x16xf32, #tpu.memory_space<vmem>>, vector<1x8x8xf32>
    %102 = vector.shape_cast %101 : vector<1x8x8xf32> to vector<8x8xf32>
    %103 = arith.addf %102, %100 : vector<8x8xf32>
    %c0_36 = arith.constant 0 : index
    %c0_37 = arith.constant 0 : index
    %c8_38 = arith.constant 8 : index
    %104 = vector.load %arg7[%c0_36, %c0_37, %c8_38] : memref<1x8x16xf32, #tpu.memory_space<vmem>>, vector<1x8x8xf32>
    %105 = vector.shape_cast %104 : vector<1x8x8xf32> to vector<8x8xf32>
    %106 = vector.shape_cast %103 : vector<8x8xf32> to vector<1x8x8xf32>
    tpu.vector_store %arg7[%c0_36, %c0_37, %c8_38], %106 {strides = array<i32>} : memref<1x8x16xf32, #tpu.memory_space<vmem>>, vector<1x8x8xf32>,
    %c0_i32_39 = arith.constant 0 : i32
    %107 = arith.cmpi eq, %arg1, %c0_i32_39 : i32
    %108 = arith.extui %107 : i1 to i32
    %c0_i32_40 = arith.constant 0 : i32
    %109 = arith.cmpi ne, %108, %c0_i32_40 : i32
    scf.if %109 {
      %c0_41 = arith.constant 0 : index
      %c0_42 = arith.constant 0 : index
      %c0_43 = arith.constant 0 : index
      %110 = vector.load %arg7[%c0_41, %c0_42, %c0_43] : memref<1x8x16xf32, #tpu.memory_space<vmem>>, vector<1x8x16xf32>
      %cst_44 = arith.constant 0.000000e+00 : f32
      %111 = vector.broadcast %cst_44 : f32 to vector<1x8x16xf32>
      %112 = arith.cmpf ogt, %110, %111 : vector<1x8x16xf32>
      %cst_45 = arith.constant 0.000000e+00 : f32
      %113 = vector.broadcast %cst_45 : f32 to vector<1x8x16xf32>
      %114 = arith.minimumf %110, %113 : vector<1x8x16xf32>
      %115 = math.exp %114 : vector<1x8x16xf32>
      %cst_46 = arith.constant 1.000000e+00 : f32
      %116 = vector.broadcast %cst_46 : f32 to vector<1x8x16xf32>
      %117 = arith.subf %115, %116 : vector<1x8x16xf32>
      %118 = arith.select %112, %110, %117 : vector<1x8x16xi1>, vector<1x8x16xf32>
      %c0_47 = arith.constant 0 : index
      %c0_48 = arith.constant 0 : index
      %c0_49 = arith.constant 0 : index
      %119 = vector.load %arg7[%c0_47, %c0_48, %c0_49] : memref<1x8x16xf32, #tpu.memory_space<vmem>>, vector<1x8x16xf32>
      tpu.vector_store %arg7[%c0_47, %c0_48, %c0_49], %118 {strides = array<i32>} : memref<1x8x16xf32, #tpu.memory_space<vmem>>, vector<1x8x16xf32>,
    } else {
    }
    return
  }
  func.func @transform_0(%arg0: i32, %arg1: i32) -> (i32, i32, i32) {
    %c0_i32 = arith.constant 0 : i32
    %c0_i32_0 = arith.constant 0 : i32
    return %arg0, %c0_i32, %arg1 : i32, i32, i32
  }
  func.func @transform_1(%arg0: i32, %arg1: i32) -> (i32, i32, i32) {
    %c0_i32 = arith.constant 0 : i32
    %c0_i32_0 = arith.constant 0 : i32
    return %arg0, %arg1, %c0_i32 : i32, i32, i32
  }
  func.func @transform_2(%arg0: i32, %arg1: i32) -> (i32, i32, i32) {
    %c0_i32 = arith.constant 0 : i32
    %c0_i32_0 = arith.constant 0 : i32
    %c0_i32_1 = arith.constant 0 : i32
    return %arg0, %c0_i32, %c0_i32_0 : i32, i32, i32
  }
  func.func @transform_3(%arg0: i32, %arg1: i32) -> (i32, i32, i32) {
    %c0_i32 = arith.constant 0 : i32
    %c0_i32_0 = arith.constant 0 : i32
    %c0_i32_1 = arith.constant 0 : i32
    return %arg0, %c0_i32, %c0_i32_0 : i32, i32, i32
  }
  func.func @transform_4(%arg0: i32, %arg1: i32) -> (i32, i32, i32) {
    %c0_i32 = arith.constant 0 : i32
    %c0_i32_0 = arith.constant 0 : i32
    return %arg0, %c0_i32, %arg1 : i32, i32, i32
  }
  func.func @transform_5(%arg0: i32, %arg1: i32) -> (i32, i32, i32) {
    %c0_i32 = arith.constant 0 : i32
    %c0_i32_0 = arith.constant 0 : i32
    %c0_i32_1 = arith.constant 0 : i32
    return %arg0, %c0_i32, %c0_i32_0 : i32, i32, i32
  }
}

</mosaic_0001>

<llo_original>
// kernel: gat_layer_pallas.2
$region0: #{gat_layer_pallas.2}
  #allocation0 [shape = 'u32[]', space=smem, size = 0x4, offset = 0x4, fixed_abs, tag = 'smem constant byte address 0x4 - core index']
  #allocation1 [shape = 'u32[144,128]{1,0:T(1,128)}', space=vmem, size = 0x12000, scoped, tag = 'internal scratch']
  %s0 = inlined_call_operand.vmem [shape: f32[16,16], index: 0, kind: input, shape index: {}]
  %s1 = inlined_call_operand.vmem [shape: f32[16,16], index: 1, kind: input, shape index: {}]
  %s2 = inlined_call_operand.vmem [shape: f32[16,128], index: 2, kind: input, shape index: {}]
  %s3 = inlined_call_operand.vmem [shape: f32[16,16], index: 3, kind: output, shape index: {0}]
  %s4 = inlined_call_operand.vmem [shape: f32[16,128], index: 4, kind: output, shape index: {1}]
  %5 = xla_tuple %s3, %s4
  %s6 = sld [smem:[#allocation0]]
  $region30: #{gat_layer_pallas.2} parent=0
    _
  %s8 = ssub.s32 1, %s6
  %s9 = scalar_select 0, %s8, %s6
  // Predicated region
  $region2: #{gat_layer_pallas.2} parent=0 // pred_check
    _
  $region3: #{gat_layer_pallas.2} parent=0 // pred_check_branch
    %11 = sbr.rel (0) target = $region5
  $region4: #{gat_layer_pallas.2} parent=0 // pred_region
    _
  $region5: #{gat_layer_pallas.2} parent=0 // pred_fallthru
    _
  // Predicated region
  $region6: #{gat_layer_pallas.2} parent=0 // pred_check
    _
  $region7: #{gat_layer_pallas.2} parent=0 // pred_check_branch
    %13 = sbr.rel (0) target = $region9
  $region8: #{gat_layer_pallas.2} parent=0 // pred_region
    _
  $region9: #{gat_layer_pallas.2} parent=0 // pred_fallthru
    _
  // Predicated region
  $region10: #{gat_layer_pallas.2} parent=0 // pred_check
    _
  $region11: #{gat_layer_pallas.2} parent=0 // pred_check_branch
    %15 = sbr.rel (0) target = $region13
  $region12: #{gat_layer_pallas.2} parent=0 // pred_region
    _
  $region13: #{gat_layer_pallas.2} parent=0 // pred_fallthru
    _
  %v16 = vld [vmem:[%s0] sm:$0xff]
  %v17 = vld [vmem:[%s0 + $0x8] sm:$0xff]
  %v18 = vld [vmem:[%s1] sm:$0xff]
  %v19 = vld [vmem:[%s1 + $0x8] sm:$0xff]
  %vm20 = vcmask 130048
  %v22 = vsel %vm20, %v16, 0
  %v25 = vsel %vm20, %v17, 0
  %27 = vmatprep.subr.mxu0 0.0
  %28 = vmatpush1.msra.mxu0 %v18
  %29 = vmatprep.subr.mxu0 0.0
  %30 = vmatpush1.msra.mxu0 %v19
  %31 = vmatprep.subr.mxu0 0.0
  %32 = vmatpush1.msra.mxu0 0.0
  %33 = vmatprep.subr.mxu0 0.0
  %34 = vmatpush1.msra.mxu0 0.0
  %35 = vmatprep.subr.mxu0 0.0
  %36 = vmatpush1.msra.mxu0 0.0
  %37 = vmatprep.subr.mxu0 0.0
  %38 = vmatpush1.msra.mxu0 0.0
  %39 = vmatprep.subr.mxu0 0.0
  %40 = vmatpush1.msra.mxu0 0.0
  %41 = vmatprep.subr.mxu0 0.0
  %42 = vmatpush1.msra.mxu0 0.0
  %43 = vmatprep.subr.mxu0 0.0
  %44 = vmatpush1.msra.mxu0 0.0
  %45 = vmatprep.subr.mxu0 0.0
  %46 = vmatpush1.msra.mxu0 0.0
  %47 = vmatprep.subr.mxu0 0.0
  %48 = vmatpush1.msra.mxu0 0.0
  %49 = vmatprep.subr.mxu0 0.0
  %50 = vmatpush1.msra.mxu0 0.0
  %51 = vmatprep.subr.mxu0 0.0
  %52 = vmatpush1.msra.mxu0 0.0
  %53 = vmatprep.subr.mxu0 0.0
  %54 = vmatpush1.msra.mxu0 0.0
  %55 = vmatprep.subr.mxu0 0.0
  %56 = vmatpush1.msra.mxu0 0.0
  %57 = vmatprep.subr.mxu0 0.0
  %58 = vmatpush1.msra.mxu0 0.0
  %59 = vmatprep.subr.mxu0 0.0
  %60 = vmatpush1.msra.mxu0 0.0
  %61 = vmatprep.subr.mxu0 0.0
  %62 = vmatpush1.msra.mxu0 0.0
  %63 = vmatprep.subr.mxu0 0.0
  %64 = vmatpush1.msra.mxu0 0.0
  %65 = vmatprep.subr.mxu0 0.0
  %66 = vmatpush1.msra.mxu0 0.0
  %67 = vmatprep.subr.mxu0 0.0
  %68 = vmatpush1.msra.mxu0 0.0
  %69 = vmatprep.subr.mxu0 0.0
  %70 = vmatpush1.msra.mxu0 0.0
  %71 = vmatprep.subr.mxu0 0.0
  %72 = vmatpush1.msra.mxu0 0.0
  %73 = vmatprep.subr.mxu0 0.0
  %74 = vmatpush1.msra.mxu0 0.0
  %75 = vmatprep.subr.mxu0 0.0
  %76 = vmatpush1.msra.mxu0 0.0
  %77 = vmatprep.subr.mxu0 0.0
  %78 = vmatpush1.msra.mxu0 0.0
  %79 = vmatprep.subr.mxu0 0.0
  %80 = vmatpush1.msra.mxu0 0.0
  %81 = vmatprep.subr.mxu0 0.0
  %82 = vmatpush1.msra.mxu0 0.0
  %83 = vmatprep.subr.mxu0 0.0
  %84 = vmatpush1.msra.mxu0 0.0
  %85 = vmatprep.subr.mxu0 0.0
  %86 = vmatpush1.msra.mxu0 0.0
  %87 = vmatprep.subr.mxu0 0.0
  %88 = vmatpush1.msra.mxu0 0.0
  %89 = vmatprep.subr.mxu0 0.0
  %90 = vmatpush1.msra.mxu0 0.0
  %91 = vmatprep.mubr.f32.mxu0 0.0
  %92 = vmatmul.mubr.f32.gmra.mrb[0].mxu0 %v22
  %v93 = vpop.f32.mrb[0].mxu0
  %v94 = vadd.f32 0.0, %v93
  %v95 = vpop.f32.mrb[0].mxu0
  %96 = vmatprep.mubr.f32.mxu0 0.0
  %97 = vmatmul.mubr.f32.gmra.mrb[0].mxu0 %v25
  %v98 = vpop.f32.mrb[0].mxu0
  %v99 = vadd.f32 0.0, %v98
  %v100 = vpop.f32.mrb[0].mxu0
  %101 = vdwg.mxu0
  %102 = vst.msk [vmem:[%s3] sm:$0xff] %vm20, %v94
  %103 = vst.msk [vmem:[%s3 + $0x8] sm:$0xff] %vm20, %v99
  %v104 = vld [vmem:[%s2] sm:$0xff]
  %v105 = vld [vmem:[%s2 + $0x8] sm:$0xff]
  %v107 = vsel %vm20, %v94, 0
  %v110 = vsel %vm20, %v99, 0
  %112 = vmatprep.subr.mxu0 0.0
  %113 = vmatpush1.msra.mxu0 %v104
  %114 = vmatprep.subr.mxu0 0.0
  %115 = vmatpush1.msra.mxu0 %v105
  %116 = vmatprep.subr.mxu0 0.0
  %117 = vmatpush1.msra.mxu0 0.0
  %118 = vmatprep.subr.mxu0 0.0
  %119 = vmatpush1.msra.mxu0 0.0
  %120 = vmatprep.subr.mxu0 0.0
  %121 = vmatpush1.msra.mxu0 0.0
  %122 = vmatprep.subr.mxu0 0.0
  %123 = vmatpush1.msra.mxu0 0.0
  %124 = vmatprep.subr.mxu0 0.0
  %125 = vmatpush1.msra.mxu0 0.0
  %126 = vmatprep.subr.mxu0 0.0
  %127 = vmatpush1.msra.mxu0 0.0
  %128 = vmatprep.subr.mxu0 0.0
  %129 = vmatpush1.msra.mxu0 0.0
  %130 = vmatprep.subr.mxu0 0.0
  %131 = vmatpush1.msra.mxu0 0.0
  %132 = vmatprep.subr.mxu0 0.0
  %133 = vmatpush1.msra.mxu0 0.0
  %134 = vmatprep.subr.mxu0 0.0
  %135 = vmatpush1.msra.mxu0 0.0
  %136 = vmatprep.subr.mxu0 0.0
  %137 = vmatpush1.msra.mxu0 0.0
  %138 = vmatprep.subr.mxu0 0.0
  %139 = vmatpush1.msra.mxu0 0.0
  %140 = vmatprep.subr.mxu0 0.0
  %141 = vmatpush1.msra.mxu0 0.0
  %142 = vmatprep.subr.mxu0 0.0
  %143 = vmatpush1.msra.mxu0 0.0
  %144 = vmatprep.subr.mxu0 0.0
  %145 = vmatpush1.msra.mxu0 0.0
  %146 = vmatprep.subr.mxu0 0.0
  %147 = vmatpush1.msra.mxu0 0.0
  %148 = vmatprep.subr.mxu0 0.0
  %149 = vmatpush1.msra.mxu0 0.0
  %150 = vmatprep.subr.mxu0 0.0
  %151 = vmatpush1.msra.mxu0 0.0
  %152 = vmatprep.subr.mxu0 0.0
  %153 = vmatpush1.msra.mxu0 0.0
  %154 = vmatprep.subr.mxu0 0.0
  %155 = vmatpush1.msra.mxu0 0.0
  %156 = vmatprep.subr.mxu0 0.0
  %157 = vmatpush1.msra.mxu0 0.0
  %158 = vmatprep.subr.mxu0 0.0
  %159 = vmatpush1.msra.mxu0 0.0
  %160 = vmatprep.subr.mxu0 0.0
  %161 = vmatpush1.msra.mxu0 0.0
  %162 = vmatprep.subr.mxu0 0.0
  %163 = vmatpush1.msra.mxu0 0.0
  %164 = vmatprep.subr.mxu0 0.0
  %165 = vmatpush1.msra.mxu0 0.0
  %166 = vmatprep.subr.mxu0 0.0
  %167 = vmatpush1.msra.mxu0 0.0
  %168 = vmatprep.subr.mxu0 0.0
  %169 = vmatpush1.msra.mxu0 0.0
  %170 = vmatprep.subr.mxu0 0.0
  %171 = vmatpush1.msra.mxu0 0.0
  %172 = vmatprep.subr.mxu0 0.0
  %173 = vmatpush1.msra.mxu0 0.0
  %174 = vmatprep.subr.mxu0 0.0
  %175 = vmatpush1.msra.mxu0 0.0
  %176 = vmatprep.mubr.f32.mxu0 0.0
  %177 = vmatmul.mubr.f32.gmra.mrb[0].mxu0 %v107
  %v178 = vpop.f32.mrb[0].mxu0
  %v179 = vadd.f32 0.0, %v178
  %v180 = vpop.f32.mrb[0].mxu0
  %181 = vmatprep.mubr.f32.mxu0 0.0
  %182 = vmatmul.mubr.f32.gmra.mrb[0].mxu0 %v110
  %v183 = vpop.f32.mrb[0].mxu0
  %v184 = vadd.f32 0.0, %v183
  %v185 = vpop.f32.mrb[0].mxu0
  %186 = vdwg.mxu0
  %187 = vst [vmem:[%s4] sm:$0xff] %v179
  %188 = vst [vmem:[%s4 + $0x8] sm:$0xff] %v184
  // Predicated region
  $region14: #{gat_layer_pallas.2} parent=0 // pred_check
    _
  $region15: #{gat_layer_pallas.2} parent=0 // pred_check_branch
    %190 = sbr.rel (0) target = $region17
  $region16: #{gat_layer_pallas.2} parent=0 // pred_region
    _
  $region17: #{gat_layer_pallas.2} parent=0 // pred_fallthru
    _
  // Predicated region
  $region18: #{gat_layer_pallas.2} parent=0 // pred_check
    _
  $region19: #{gat_layer_pallas.2} parent=0 // pred_check_branch
    %192 = sbr.rel (0) target = $region21
  $region20: #{gat_layer_pallas.2} parent=0 // pred_region
    _
  $region21: #{gat_layer_pallas.2} parent=0 // pred_fallthru
    _
  // Predicated region
  $region22: #{gat_layer_pallas.2} parent=0 // pred_check
    _
  $region23: #{gat_layer_pallas.2} parent=0 // pred_check_branch
    %194 = sbr.rel (0) target = $region25
  $region24: #{gat_layer_pallas.2} parent=0 // pred_region
    _
  $region25: #{gat_layer_pallas.2} parent=0 // pred_fallthru
    _
  // Predicated region
  $region26: #{gat_layer_pallas.2} parent=0 // pred_check
    _
  $region27: #{gat_layer_pallas.2} parent=0 // pred_check_branch
    %196 = sbr.rel (0) target = $region29
  $region28: #{gat_layer_pallas.2} parent=0 // pred_region
    _
  $region29: #{gat_layer_pallas.2} parent=0 // pred_fallthru
    _

// kernel: gat_layer_pallas.3
$region0: #{gat_layer_pallas.3}
  #allocation0 [shape = 'u32[]', space=smem, size = 0x4, offset = 0x4, fixed_abs, tag = 'smem constant byte address 0x4 - core index']
  #allocation1 [shape = 'u32[144,128]{1,0:T(1,128)}', space=vmem, size = 0x12000, scoped, tag = 'internal scratch']
  %s0 = inlined_call_operand.vmem [shape: bf16[2,8,8], index: 0, kind: input, shape index: {}]
  %s1 = inlined_call_operand.vmem [shape: f32[2,8,16], index: 1, kind: input, shape index: {}]
  %s2 = inlined_call_operand.vmem [shape: f32[2,8,2], index: 2, kind: input, shape index: {}]
  %s3 = inlined_call_operand.vmem [shape: f32[2,8,2], index: 3, kind: input, shape index: {}]
  %s4 = inlined_call_operand.vmem [shape: f32[2,2,8], index: 4, kind: input, shape index: {}]
  %s5 = inlined_call_operand.hbm [shape: f32[2,8,16], index: 5, kind: output, shape index: {}]
  %s6 = sld [smem:[#allocation0]]
  $region61: #{gat_layer_pallas.3} parent=0
    _
  %s8 = ssub.s32 1, %s6
  %s9 = scalar_select 0, %s8, %s6
  $region1: #{gat_layer_pallas.3} parent=0
    #allocation2 [shape = 'u8[8192]{0}', space=vmem, size = 0x2000, scoped, tag = 'output window, operand 0']
    #allocation3 [shape = 's32[2]{0}', space=sflag, size = 0x8, scoped, tag = 'scoped memory for gat_layer_pallas.3']
    %10 = vsyncpa [#allocation3], 0
    %s11 = scalar_lea.sflag [#allocation3], 1
    %12 = vsyncpa %s11, 0
    loop: start=0, step=1, limit=4
    $region2: #{gat_layer_pallas.3} parent=1 // loop_pre_header
      _
    $region3: #{gat_layer_pallas.3} parent=1 // loop_header
      %s14 = sphi 0, %s18
      %p15 = scmp.ge.s32.totalorder %s14, 4
      %s21 = sphi 0, %s33
      %s22 = sphi 0, %s29
      %s23 = sphi 0, %s21
      %s24 = sphi 0, %s22
      %s25 = sphi 0, %s23
      %s26 = sphi 0, %s24
      %s38 = sphi 0, %s40
      %s41 = sphi 0, %s38
      %s42 = sphi 0, %s41
      %s58 = sphi 0, %s42
      %s66 = sphi 0, %s68
      %s69 = sphi 0, %s66
      %s70 = sphi 0, %s69
      %s86 = sphi 0, %s70
      %s92 = sphi 0, %s94
      %s95 = sphi 0, %s92
      %s96 = sphi 0, %s95
      %s112 = sphi 0, %s96
      %s118 = sphi 0, %s120
      %s121 = sphi 0, %s118
      %s122 = sphi 0, %s121
      %s138 = sphi 0, %s122
      %s146 = sphi 0, %s148
      %s149 = sphi 0, %s146
      %s150 = sphi 0, %s149
      %s166 = sphi 0, %s150
      %s172 = sphi 0, %s174
      %s175 = sphi 0, %s172
      %s176 = sphi 0, %s175
      %s192 = sphi 0, %s176
    $region4: #{gat_layer_pallas.3} parent=1 // loop_header_branch
      %17 = sbr.rel (%p15) target = $region8
    $region5: #{gat_layer_pallas.3} parent=1 // loop_body
      %s19 = ssub.s32 %s14, 1
      %s20 = ssub.s32 %s14, 2
      %s27 = sadd.s32 1, %s22
      %p28 = scmp.ge.s32.totalorder %s27, 1
      %s29 = scalar_select %p28, 0, %s27
      %s30 = sadd.s32 1, %s21
      %s31 = scalar_select %p28, %s30, %s21
      %p32 = scmp.ge.s32.totalorder %s31, 2
      %s33 = scalar_select %p32, 0, %s31
      %s34 = ssub.s32 %s21, %s33
      %s35 = ssub.s32 %s22, %s29
      %s36 = sor.u32 %s34, %s35
      %p37 = scmp.eq.s32.totalorder %s36, 0
      %s39 = sadd.s32 %s38, 1
      %s40 = scalar_select %p37, %s38, %s39
      %p43 = pneg %p37
      %p44 = scmp.eq.s32.totalorder %s14, 1
      %p45 = por %p43, %p44
      %p46 = scmp.ne.s32.totalorder %s38, %s41
      %p47 = scmp.eq.s32.totalorder %s14, 0
      %p48 = por %p46, %p47
      %p49 = scmp.ne.s32.totalorder %s38, %s41
      %p50 = scmp.eq.s32.totalorder %s19, 1
      %p51 = por %p49, %p50
      %p52 = scmp.ne.s32.totalorder %s41, %s42
      %p53 = scmp.eq.s32.totalorder %s19, 0
      %p54 = por %p52, %p53
      %p55 = scmp.ne.s32.totalorder %s41, %s42
      %p56 = scmp.eq.s32.totalorder %s20, 1
      %p57 = por %p55, %p56
      %p59 = scmp.ne.s32.totalorder %s42, %s58
      %p60 = scmp.eq.s32.totalorder %s20, 0
      %p61 = por %p59, %p60
      %s62 = ssub.s32 %s21, %s33
      %s63 = ssub.s32 %s22, %s29
      %s64 = sor.u32 %s62, %s63
      %p65 = scmp.eq.s32.totalorder %s64, 0
      %s67 = sadd.s32 %s66, 1
      %s68 = scalar_select %p65, %s66, %s67
      %p71 = pneg %p65
      %p72 = scmp.eq.s32.totalorder %s14, 1
      %p73 = por %p71, %p72
      %p74 = scmp.ne.s32.totalorder %s66, %s69
      %p75 = scmp.eq.s32.totalorder %s14, 0
      %p76 = por %p74, %p75
      %p77 = scmp.ne.s32.totalorder %s66, %s69
      %p78 = scmp.eq.s32.totalorder %s19, 1
      %p79 = por %p77, %p78
      %p80 = scmp.ne.s32.totalorder %s69, %s70
      %p81 = scmp.eq.s32.totalorder %s19, 0
      %p82 = por %p80, %p81
      %p83 = scmp.ne.s32.totalorder %s69, %s70
      %p84 = scmp.eq.s32.totalorder %s20, 1
      %p85 = por %p83, %p84
      %p87 = scmp.ne.s32.totalorder %s70, %s86
      %p88 = scmp.eq.s32.totalorder %s20, 0
      %p89 = por %p87, %p88
      %s90 = ssub.s32 %s21, %s33
      %p91 = scmp.eq.s32.totalorder %s90, 0
      %s93 = sadd.s32 %s92, 1
      %s94 = scalar_select %p91, %s92, %s93
      %p97 = pneg %p91
      %p98 = scmp.eq.s32.totalorder %s14, 1
      %p99 = por %p97, %p98
      %p100 = scmp.ne.s32.totalorder %s92, %s95
      %p101 = scmp.eq.s32.totalorder %s14, 0
      %p102 = por %p100, %p101
      %p103 = scmp.ne.s32.totalorder %s92, %s95
      %p104 = scmp.eq.s32.totalorder %s19, 1
      %p105 = por %p103, %p104
      %p106 = scmp.ne.s32.totalorder %s95, %s96
      %p107 = scmp.eq.s32.totalorder %s19, 0
      %p108 = por %p106, %p107
      %p109 = scmp.ne.s32.totalorder %s95, %s96
      %p110 = scmp.eq.s32.totalorder %s20, 1
      %p111 = por %p109, %p110
      %p113 = scmp.ne.s32.totalorder %s96, %s112
      %p114 = scmp.eq.s32.totalorder %s20, 0
      %p115 = por %p113, %p114
      %s116 = ssub.s32 %s21, %s33
      %p117 = scmp.eq.s32.totalorder %s116, 0
      %s119 = sadd.s32 %s118, 1
      %s120 = scalar_select %p117, %s118, %s119
      %p123 = pneg %p117
      %p124 = scmp.eq.s32.totalorder %s14, 1
      %p125 = por %p123, %p124
      %p126 = scmp.ne.s32.totalorder %s118, %s121
      %p127 = scmp.eq.s32.totalorder %s14, 0
      %p128 = por %p126, %p127
      %p129 = scmp.ne.s32.totalorder %s118, %s121
      %p130 = scmp.eq.s32.totalorder %s19, 1
      %p131 = por %p129, %p130
      %p132 = scmp.ne.s32.totalorder %s121, %s122
      %p133 = scmp.eq.s32.totalorder %s19, 0
      %p134 = por %p132, %p133
      %p135 = scmp.ne.s32.totalorder %s121, %s122
      %p136 = scmp.eq.s32.totalorder %s20, 1
      %p137 = por %p135, %p136
      %p139 = scmp.ne.s32.totalorder %s122, %s138
      %p140 = scmp.eq.s32.totalorder %s20, 0
      %p141 = por %p139, %p140
      %s142 = ssub.s32 %s21, %s33
      %s143 = ssub.s32 %s22, %s29
      %s144 = sor.u32 %s142, %s143
      %p145 = scmp.eq.s32.totalorder %s144, 0
      %s147 = sadd.s32 %s146, 1
      %s148 = scalar_select %p145, %s146, %s147
      %p151 = pneg %p145
      %p152 = scmp.eq.s32.totalorder %s14, 1
      %p153 = por %p151, %p152
      %p154 = scmp.ne.s32.totalorder %s146, %s149
      %p155 = scmp.eq.s32.totalorder %s14, 0
      %p156 = por %p154, %p155
      %p157 = scmp.ne.s32.totalorder %s146, %s149
      %p158 = scmp.eq.s32.totalorder %s19, 1
      %p159 = por %p157, %p158
      %p160 = scmp.ne.s32.totalorder %s149, %s150
      %p161 = scmp.eq.s32.totalorder %s19, 0
      %p162 = por %p160, %p161
      %p163 = scmp.ne.s32.totalorder %s149, %s150
      %p164 = scmp.eq.s32.totalorder %s20, 1
      %p165 = por %p163, %p164
      %p167 = scmp.ne.s32.totalorder %s150, %s166
      %p168 = scmp.eq.s32.totalorder %s20, 0
      %p169 = por %p167, %p168
      %s170 = ssub.s32 %s21, %s33
      %p171 = scmp.eq.s32.totalorder %s170, 0
      %s173 = sadd.s32 %s172, 1
      %s174 = scalar_select %p171, %s172, %s173
      %p177 = pneg %p171
      %p178 = scmp.eq.s32.totalorder %s14, 1
      %p179 = por %p177, %p178
      %p180 = scmp.ne.s32.totalorder %s172, %s175
      %p181 = scmp.eq.s32.totalorder %s14, 0
      %p182 = por %p180, %p181
      %p183 = scmp.ne.s32.totalorder %s172, %s175
      %p184 = scmp.eq.s32.totalorder %s19, 1
      %p185 = por %p183, %p184
      %p186 = scmp.ne.s32.totalorder %s175, %s176
      %p187 = scmp.eq.s32.totalorder %s19, 0
      %p188 = por %p186, %p187
      %p189 = scmp.ne.s32.totalorder %s175, %s176
      %p190 = scmp.eq.s32.totalorder %s20, 1
      %p191 = por %p189, %p190
      %p193 = scmp.ne.s32.totalorder %s176, %s192
      %p194 = scmp.eq.s32.totalorder %s20, 0
      %p195 = por %p193, %p194
      %p196 = scmp.le.s32.totalorder 1, %s14
      %p197 = scmp.lt.s32.totalorder %s14, 3
      %p198 = pnand %p196, %p197
      %p199 = pneg %p198
      // Predicated region
      $region9: #{gat_layer_pallas.3} parent=5 // pred_check
        _
      $region10: #{gat_layer_pallas.3} parent=5 // pred_check_branch
        %201 = sbr.rel (%p198) target = $region12
      $region11: #{gat_layer_pallas.3} parent=5 // pred_region
        %s202 = ssub.s32 %s14, 1
      $region12: #{gat_layer_pallas.3} parent=5 // pred_fallthru
        _
      %p203 = scmp.lt.s32.totalorder %s14, 2
      // Predicated region
      $region13: #{gat_layer_pallas.3} parent=5 // pred_check
        %p204 = pneg %p203
      $region14: #{gat_layer_pallas.3} parent=5 // pred_check_branch
        %206 = sbr.rel (%p204) target = $region16
      $region15: #{gat_layer_pallas.3} parent=5 // pred_region
        // Predicated region
        $region17: #{gat_layer_pallas.3} parent=15 // pred_check
          %p207 = pneg %p48
        $region18: #{gat_layer_pallas.3} parent=15 // pred_check_branch
          %209 = sbr.rel (%p207) target = $region20
        $region19: #{gat_layer_pallas.3} parent=15 // pred_region
          %p210 = scmp.lt.s32.totalorder %s21, 1
          %s211 = scalar_select %p210, %s21, 1
          %p212 = scmp.lt.s32.totalorder %s22, 0
          %s213 = scalar_select %p212, %s22, 0
          %s214 = sadd.s32 %s213, %s211
          %s215 = smul.addr %s214, 4
          %s216 = scalar_lea.vmem %s0, %s215
        $region20: #{gat_layer_pallas.3} parent=15 // pred_fallthru
          _
        // Predicated region
        $region21: #{gat_layer_pallas.3} parent=15 // pred_check
          %p217 = pneg %p76
        $region22: #{gat_layer_pallas.3} parent=15 // pred_check_branch
          %219 = sbr.rel (%p217) target = $region24
        $region23: #{gat_layer_pallas.3} parent=15 // pred_region
          %p220 = scmp.lt.s32.totalorder %s21, 1
          %s221 = scalar_select %p220, %s21, 1
          %p222 = scmp.lt.s32.totalorder %s22, 0
          %s223 = scalar_select %p222, %s22, 0
          %s224 = sadd.s32 %s223, %s221
          %s225 = smul.addr %s224, 8
          %s226 = scalar_lea.vmem %s1, %s225
        $region24: #{gat_layer_pallas.3} parent=15 // pred_fallthru
          _
        // Predicated region
        $region25: #{gat_layer_pallas.3} parent=15 // pred_check
          %p227 = pneg %p102
        $region26: #{gat_layer_pallas.3} parent=15 // pred_check_branch
          %229 = sbr.rel (%p227) target = $region28
        $region27: #{gat_layer_pallas.3} parent=15 // pred_region
          %p230 = scmp.lt.s32.totalorder %s21, 1
          %s231 = scalar_select %p230, %s21, 1
          %s232 = smul.addr %s231, 8
          %s233 = scalar_lea.vmem %s2, %s232
        $region28: #{gat_layer_pallas.3} parent=15 // pred_fallthru
          _
        // Predicated region
        $region29: #{gat_layer_pallas.3} parent=15 // pred_check
          %p234 = pneg %p128
        $region30: #{gat_layer_pallas.3} parent=15 // pred_check_branch
          %236 = sbr.rel (%p234) target = $region32
        $region31: #{gat_layer_pallas.3} parent=15 // pred_region
          %p237 = scmp.lt.s32.totalorder %s21, 1
          %s238 = scalar_select %p237, %s21, 1
          %s239 = smul.addr %s238, 8
          %s240 = scalar_lea.vmem %s3, %s239
        $region32: #{gat_layer_pallas.3} parent=15 // pred_fallthru
          _
        // Predicated region
        $region33: #{gat_layer_pallas.3} parent=15 // pred_check
          %p241 = pneg %p156
        $region34: #{gat_layer_pallas.3} parent=15 // pred_check_branch
          %243 = sbr.rel (%p241) target = $region36
        $region35: #{gat_layer_pallas.3} parent=15 // pred_region
          %p244 = scmp.lt.s32.totalorder %s21, 1
          %s245 = scalar_select %p244, %s21, 1
          %p246 = scmp.lt.s32.totalorder %s22, 0
          %s247 = scalar_select %p246, %s22, 0
          %s248 = sadd.s32 %s247, %s245
          %s249 = smul.addr %s248, 2
          %s250 = scalar_lea.vmem %s4, %s249
        $region36: #{gat_layer_pallas.3} parent=15 // pred_fallthru
          _
      $region16: #{gat_layer_pallas.3} parent=5 // pred_fallthru
        _
      %p251 = scmp.le.s32.totalorder 1, %s14
      %p252 = scmp.lt.s32.totalorder %s14, 3
      %p253 = pnand %p251, %p252
      %p254 = pneg %p253
      // Predicated region
      $region37: #{gat_layer_pallas.3} parent=5 // pred_check
        _
      $region38: #{gat_layer_pallas.3} parent=5 // pred_check_branch
        %256 = sbr.rel (%p253) target = $region40
      $region39: #{gat_layer_pallas.3} parent=5 // pred_region
        %s257 = ssub.s32 %s14, 1
        %p258 = scmp.lt.s32.totalorder %s23, 1
        %s259 = scalar_select %p258, %s23, 1
        %p260 = scmp.lt.s32.totalorder %s24, 0
        %s261 = scalar_select %p260, %s24, 0
        %s262 = sadd.s32 %s261, %s259
        %s263 = smul.addr %s262, 4
        %s264 = scalar_lea.vmem %s0, %s263
        %p265 = pneg %p54
        %p266 = pneg %p51
        %p267 = scmp.lt.s32.totalorder %s23, 1
        %s268 = scalar_select %p267, %s23, 1
        %p269 = scmp.lt.s32.totalorder %s24, 0
        %s270 = scalar_select %p269, %s24, 0
        %s271 = sadd.s32 %s270, %s268
        %s272 = smul.addr %s271, 8
        %s273 = scalar_lea.vmem %s1, %s272
        %p274 = pneg %p82
        %p275 = pneg %p79
        %p276 = scmp.lt.s32.totalorder %s23, 1
        %s277 = scalar_select %p276, %s23, 1
        %s278 = smul.addr %s277, 8
        %s279 = scalar_lea.vmem %s2, %s278
        %p280 = pneg %p108
        %p281 = pneg %p105
        %p282 = scmp.lt.s32.totalorder %s23, 1
        %s283 = scalar_select %p282, %s23, 1
        %s284 = smul.addr %s283, 8
        %s285 = scalar_lea.vmem %s3, %s284
        %p286 = pneg %p134
        %p287 = pneg %p131
        %p288 = scmp.lt.s32.totalorder %s23, 1
        %s289 = scalar_select %p288, %s23, 1
        %p290 = scmp.lt.s32.totalorder %s24, 0
        %s291 = scalar_select %p290, %s24, 0
        %s292 = sadd.s32 %s291, %s289
        %s293 = smul.addr %s292, 2
        %s294 = scalar_lea.vmem %s4, %s293
        %p295 = pneg %p162
        %p296 = pneg %p159
        %p297 = pneg %p188
        %p298 = pneg %p185
        %s299 = sand.u32 %s175, 1
        %s300 = scalar_lea.sflag [#allocation3], %s299
        %s301 = sand.u32 %s175, 1
        %s302 = smul.addr %s301, 8
        %s303 = scalar_lea.vmem [#allocation2], %s302
        %p304 = scmp.lt.s32.totalorder %s23, 1
        %s305 = scalar_select %p304, %s23, 1
        %p306 = scmp.lt.s32.totalorder %s24, 0
        %s307 = scalar_select %p306, %s24, 0
        %s308 = sadd.s32 %s307, %s305
        %s309 = smul.addr %s308, 4
        %s310 = scalar_lea.vmem %s0, %s309
        %p311 = scmp.lt.s32.totalorder %s23, 1
        %s312 = scalar_select %p311, %s23, 1
        %p313 = scmp.lt.s32.totalorder %s24, 0
        %s314 = scalar_select %p313, %s24, 0
        %s315 = sadd.s32 %s314, %s312
        %s316 = smul.addr %s315, 8
        %s317 = scalar_lea.vmem %s1, %s316
        %p318 = scmp.lt.s32.totalorder %s23, 1
        %s319 = scalar_select %p318, %s23, 1
        %s320 = smul.addr %s319, 8
        %s321 = scalar_lea.vmem %s2, %s320
        %p322 = scmp.lt.s32.totalorder %s23, 1
        %s323 = scalar_select %p322, %s23, 1
        %s324 = smul.addr %s323, 8
        %s325 = scalar_lea.vmem %s3, %s324
        %p326 = scmp.lt.s32.totalorder %s23, 1
        %s327 = scalar_select %p326, %s23, 1
        %p328 = scmp.lt.s32.totalorder %s24, 0
        %s329 = scalar_select %p328, %s24, 0
        %s330 = sadd.s32 %s329, %s327
        %s331 = smul.addr %s330, 2
        %s332 = scalar_lea.vmem %s4, %s331
        %v333 = vld [vmem:[%s310] sm:$0xf]
        %v334 = vunpack.c.l.bf16 %v333
        %vm335 = vcmp.gt.f32.partialorder %v334, 0.0
        %s336 = smul.u32 %s24, 8
        %v337 = vlaneseq
        %v338 = vshrl.u32 %v337, 7
        %vm339 = vcmp.lt.s32.totalorder %v338, 4
        %v340 = vlaneseq
        %v341 = vand.u32 %v340, 127
        %v342 = vstv %s336
        %v343 = vadd.s32 %v342, %v341
        %vm344 = vcmp.lt.s32.totalorder %v343, 4
        %v345 = vld [vmem:[%s321] sm:$0xff]
        %v346 = vld [vmem:[%s325] sm:$0xff]
        %v347 = vld [vmem:[%s332] sm:$0x3]
        %v348 = vld [vmem:[%s317] sm:$0xff]
        %p349 = scmp.eq.s32.totalorder %s24, 0
        // Predicated region
        $region41: #{gat_layer_pallas.3} parent=39 // pred_check
          %p350 = pneg %p349
        $region42: #{gat_layer_pallas.3} parent=39 // pred_check_branch
          %352 = sbr.rel (%p350) target = $region44
        $region43: #{gat_layer_pallas.3} parent=39 // pred_region
          %vm353 = vcmask 130048
          %354 = vst.msk [vmem:[%s303] sm:$0xff] %vm353, 0.0
        $region44: #{gat_layer_pallas.3} parent=39 // pred_fallthru
          _
        %v355 = vsel %vm344, 1, 0
        %vm356 = vcmp.eq.s32.totalorder %v355, 1
        %358 = vset.pattern.permute.xlu0 0
        %359 = vperm.xlu0 %358, %v345
        %v360 = vpop.permute.xlu0 %359
        %363 = vset.pattern.permute.xlu0 0
        %364 = vperm.xlu0 %363, %v346
        %v365 = vpop.permute.xlu0 %364
        %v367 = vsel %vm356, %v360, %v365
        %v368 = vsel %vm339, 1, 0
        %vm369 = vcmp.eq.s32.totalorder %v368, 1
        %v370 = vlaneseq
        %v371 = vshrl.u32 %v370, 7
        %v372 = vsub.s32 0, %v371
        %v373 = vrot.slane %v347, %v372
        %v374 = vsel %vm369, %v367, %v373
        %vm375 = vcmp.gt.f32.partialorder %v374, 0.0
        %v376 = vmul.f32 %v374, 0.2
        %v377 = vsel %vm375, %v374, %v376
        %v378 = vsel %vm335, %v377, -9e+15
        %v379 = vmul.f32 %v378, %v334
        %vm380 = vcmask 64512
        %v381 = vsel %vm380, %v379, -inf
        %v382 = vrot.slane %v381, 4
        %v383 = vmax.f32 %v381, %v382
        %v384 = vrot.slane %v383, 2
        %v385 = vmax.f32 %v383, %v384
        %v386 = vrot.slane %v385, 1
        %v387 = vmax.f32 %v385, %v386
        %v388 = vsub.f32 %v379, %v387
        %v389 = vmul.f32 %v388, 1.442695
        %v390 = vpow.pop %v389
        %v391 = vsel %vm380, %v390, 0.0
        %v392 = vrot.slane %v391, 4
        %v393 = vadd.f32 %v391, %v392
        %v394 = vrot.slane %v393, 2
        %v395 = vadd.f32 %v393, %v394
        %v396 = vrot.slane %v395, 1
        %v397 = vadd.f32 %v395, %v396
        %v398 = vrcp.pop %v397
        %v399 = vmul.f32 %v390, %v398
        %v401 = vsel %vm380, %v399, 0
        %403 = vmatprep.subr.mxu0 0.0
        %404 = vmatpush1.msra.mxu0 %v348
        %405 = vmatprep.subr.mxu0 0.0
        %406 = vmatpush1.msra.mxu0 0.0
        %407 = vmatprep.subr.mxu0 0.0
        %408 = vmatpush1.msra.mxu0 0.0
        %409 = vmatprep.subr.mxu0 0.0
        %410 = vmatpush1.msra.mxu0 0.0
        %411 = vmatprep.subr.mxu0 0.0
        %412 = vmatpush1.msra.mxu0 0.0
        %413 = vmatprep.subr.mxu0 0.0
        %414 = vmatpush1.msra.mxu0 0.0
        %415 = vmatprep.subr.mxu0 0.0
        %416 = vmatpush1.msra.mxu0 0.0
        %417 = vmatprep.subr.mxu0 0.0
        %418 = vmatpush1.msra.mxu0 0.0
        %419 = vmatprep.subr.mxu0 0.0
        %420 = vmatpush1.msra.mxu0 0.0
        %421 = vmatprep.subr.mxu0 0.0
        %422 = vmatpush1.msra.mxu0 0.0
        %423 = vmatprep.subr.mxu0 0.0
        %424 = vmatpush1.msra.mxu0 0.0
        %425 = vmatprep.subr.mxu0 0.0
        %426 = vmatpush1.msra.mxu0 0.0
        %427 = vmatprep.subr.mxu0 0.0
        %428 = vmatpush1.msra.mxu0 0.0
        %429 = vmatprep.subr.mxu0 0.0
        %430 = vmatpush1.msra.mxu0 0.0
        %431 = vmatprep.subr.mxu0 0.0
        %432 = vmatpush1.msra.mxu0 0.0
        %433 = vmatprep.subr.mxu0 0.0
        %434 = vmatpush1.msra.mxu0 0.0
        %435 = vmatprep.subr.mxu0 0.0
        %436 = vmatpush1.msra.mxu0 0.0
        %437 = vmatprep.subr.mxu0 0.0
        %438 = vmatpush1.msra.mxu0 0.0
        %439 = vmatprep.subr.mxu0 0.0
        %440 = vmatpush1.msra.mxu0 0.0
        %441 = vmatprep.subr.mxu0 0.0
        %442 = vmatpush1.msra.mxu0 0.0
        %443 = vmatprep.subr.mxu0 0.0
        %444 = vmatpush1.msra.mxu0 0.0
        %445 = vmatprep.subr.mxu0 0.0
        %446 = vmatpush1.msra.mxu0 0.0
        %447 = vmatprep.subr.mxu0 0.0
        %448 = vmatpush1.msra.mxu0 0.0
        %449 = vmatprep.subr.mxu0 0.0
        %450 = vmatpush1.msra.mxu0 0.0
        %451 = vmatprep.subr.mxu0 0.0
        %452 = vmatpush1.msra.mxu0 0.0
        %453 = vmatprep.subr.mxu0 0.0
        %454 = vmatpush1.msra.mxu0 0.0
        %455 = vmatprep.subr.mxu0 0.0
        %456 = vmatpush1.msra.mxu0 0.0
        %457 = vmatprep.subr.mxu0 0.0
        %458 = vmatpush1.msra.mxu0 0.0
        %459 = vmatprep.subr.mxu0 0.0
        %460 = vmatpush1.msra.mxu0 0.0
        %461 = vmatprep.subr.mxu0 0.0
        %462 = vmatpush1.msra.mxu0 0.0
        %463 = vmatprep.subr.mxu0 0.0
        %464 = vmatpush1.msra.mxu0 0.0
        %465 = vmatprep.subr.mxu0 0.0
        %466 = vmatpush1.msra.mxu0 0.0
        %467 = vmatprep.mubr.f32.mxu0 0.0
        %468 = vmatmul.mubr.f32.gmra.mrb[0].mxu0 %v401
        %v469 = vpop.f32.mrb[0].mxu0
        %v470 = vadd.f32 0.0, %v469
        %v471 = vpop.f32.mrb[0].mxu0
        %472 = vdwg.mxu0
        %v473 = vld [vmem:[%s303] sm:$0xff]
        %v474 = vadd.f32 %v473, %v470
        %475 = vst.msk [vmem:[%s303] sm:$0xff] %vm380, %v474
        %476 = vset.pattern.permute.xlu0 1
        %477 = vperm.xlu0 %476, %v345
        %v478 = vpop.permute.xlu0 %477
        %480 = vset.pattern.permute.xlu0 1
        %481 = vperm.xlu0 %480, %v346
        %v482 = vpop.permute.xlu0 %481
        %v484 = vsel %vm356, %v478, %v482
        %v485 = vlaneseq
        %v486 = vshrl.u32 %v485, 7
        %v487 = vsub.s32 1, %v486
        %v488 = vrot.slane %v347, %v487
        %v489 = vsel %vm369, %v484, %v488
        %vm490 = vcmp.gt.f32.partialorder %v489, 0.0
        %v491 = vmul.f32 %v489, 0.2
        %v492 = vsel %vm490, %v489, %v491
        %v493 = vsel %vm335, %v492, -9e+15
        %v494 = vmul.f32 %v493, %v334
        %v495 = vsel %vm380, %v494, -inf
        %v496 = vrot.slane %v495, 4
        %v497 = vmax.f32 %v495, %v496
        %v498 = vrot.slane %v497, 2
        %v499 = vmax.f32 %v497, %v498
        %v500 = vrot.slane %v499, 1
        %v501 = vmax.f32 %v499, %v500
        %v502 = vsub.f32 %v494, %v501
        %v503 = vmul.f32 %v502, 1.442695
        %v504 = vpow.pop %v503
        %v505 = vsel %vm380, %v504, 0.0
        %v506 = vrot.slane %v505, 4
        %v507 = vadd.f32 %v505, %v506
        %v508 = vrot.slane %v507, 2
        %v509 = vadd.f32 %v507, %v508
        %v510 = vrot.slane %v509, 1
        %v511 = vadd.f32 %v509, %v510
        %v512 = vrcp.pop %v511
        %v513 = vmul.f32 %v504, %v512
        %515 = vrot.lane.b32.xlu0 %v348, 120
        %v516 = vpop.permute.xlu0 %515
        %v519 = vsel %vm380, %v513, 0
        %521 = vmatprep.subr.mxu0 0.0
        %522 = vmatpush1.msra.mxu0 %v516
        %523 = vmatprep.subr.mxu0 0.0
        %524 = vmatpush1.msra.mxu0 0.0
        %525 = vmatprep.subr.mxu0 0.0
        %526 = vmatpush1.msra.mxu0 0.0
        %527 = vmatprep.subr.mxu0 0.0
        %528 = vmatpush1.msra.mxu0 0.0
        %529 = vmatprep.subr.mxu0 0.0
        %530 = vmatpush1.msra.mxu0 0.0
        %531 = vmatprep.subr.mxu0 0.0
        %532 = vmatpush1.msra.mxu0 0.0
        %533 = vmatprep.subr.mxu0 0.0
        %534 = vmatpush1.msra.mxu0 0.0
        %535 = vmatprep.subr.mxu0 0.0
        %536 = vmatpush1.msra.mxu0 0.0
        %537 = vmatprep.subr.mxu0 0.0
        %538 = vmatpush1.msra.mxu0 0.0
        %539 = vmatprep.subr.mxu0 0.0
        %540 = vmatpush1.msra.mxu0 0.0
        %541 = vmatprep.subr.mxu0 0.0
        %542 = vmatpush1.msra.mxu0 0.0
        %543 = vmatprep.subr.mxu0 0.0
        %544 = vmatpush1.msra.mxu0 0.0
        %545 = vmatprep.subr.mxu0 0.0
        %546 = vmatpush1.msra.mxu0 0.0
        %547 = vmatprep.subr.mxu0 0.0
        %548 = vmatpush1.msra.mxu0 0.0
        %549 = vmatprep.subr.mxu0 0.0
        %550 = vmatpush1.msra.mxu0 0.0
        %551 = vmatprep.subr.mxu0 0.0
        %552 = vmatpush1.msra.mxu0 0.0
        %553 = vmatprep.subr.mxu0 0.0
        %554 = vmatpush1.msra.mxu0 0.0
        %555 = vmatprep.subr.mxu0 0.0
        %556 = vmatpush1.msra.mxu0 0.0
        %557 = vmatprep.subr.mxu0 0.0
        %558 = vmatpush1.msra.mxu0 0.0
        %559 = vmatprep.subr.mxu0 0.0
        %560 = vmatpush1.msra.mxu0 0.0
        %561 = vmatprep.subr.mxu0 0.0
        %562 = vmatpush1.msra.mxu0 0.0
        %563 = vmatprep.subr.mxu0 0.0
        %564 = vmatpush1.msra.mxu0 0.0
        %565 = vmatprep.subr.mxu0 0.0
        %566 = vmatpush1.msra.mxu0 0.0
        %567 = vmatprep.subr.mxu0 0.0
        %568 = vmatpush1.msra.mxu0 0.0
        %569 = vmatprep.subr.mxu0 0.0
        %570 = vmatpush1.msra.mxu0 0.0
        %571 = vmatprep.subr.mxu0 0.0
        %572 = vmatpush1.msra.mxu0 0.0
        %573 = vmatprep.subr.mxu0 0.0
        %574 = vmatpush1.msra.mxu0 0.0
        %575 = vmatprep.subr.mxu0 0.0
        %576 = vmatpush1.msra.mxu0 0.0
        %577 = vmatprep.subr.mxu0 0.0
        %578 = vmatpush1.msra.mxu0 0.0
        %579 = vmatprep.subr.mxu0 0.0
        %580 = vmatpush1.msra.mxu0 0.0
        %581 = vmatprep.subr.mxu0 0.0
        %582 = vmatpush1.msra.mxu0 0.0
        %583 = vmatprep.subr.mxu0 0.0
        %584 = vmatpush1.msra.mxu0 0.0
        %585 = vmatprep.mubr.f32.mxu0 0.0
        %586 = vmatmul.mubr.f32.gmra.mrb[0].mxu0 %v519
        %v587 = vpop.f32.mrb[0].mxu0
        %v588 = vadd.f32 0.0, %v587
        %v589 = vpop.f32.mrb[0].mxu0
        %590 = vdwg.mxu0
        %v591 = vld [vmem:[%s303] sm:$0xff]
        %593 = vrot.lane.b32.xlu0 %v588, 8
        %v594 = vpop.permute.xlu0 %593
        %v596 = vadd.f32 %v591, %v594
        %vm597 = vcmask 130112
        %598 = vst.msk [vmem:[%s303] sm:$0xff] %vm597, %v596
        // Predicated region
        $region45: #{gat_layer_pallas.3} parent=39 // pred_check
          %p599 = pneg %p349
        $region46: #{gat_layer_pallas.3} parent=39 // pred_check_branch
          %601 = sbr.rel (%p599) target = $region48
        $region47: #{gat_layer_pallas.3} parent=39 // pred_region
          %v602 = vld [vmem:[%s303] sm:$0xff]
          %vm603 = vcmp.gt.f32.partialorder %v602, 0.0
          %v604 = vmin.f32 %v602, 0.0
          %v605 = vmul.f32 %v604, 1.442695
          %v606 = vpow.pop %v605
          %v607 = vsub.f32 %v606, 1.0
          %v608 = vsel %vm603, %v602, %v607
          %vm609 = vcmask 130048
          %610 = vst.msk [vmem:[%s303] sm:$0xff] %vm609, %v608
        $region48: #{gat_layer_pallas.3} parent=39 // pred_fallthru
          _
        %s611 = sand.u32 %s175, 1
        %s612 = scalar_lea.sflag [#allocation3], %s611
        %s613 = sand.u32 %s175, 1
        %s614 = smul.addr %s613, 8
        %s615 = scalar_lea.vmem [#allocation2], %s614
        // Predicated region
        $region49: #{gat_layer_pallas.3} parent=39 // pred_check
          %p616 = pneg %p185
        $region50: #{gat_layer_pallas.3} parent=39 // pred_check_branch
          %618 = sbr.rel (%p616) target = $region52
        $region51: #{gat_layer_pallas.3} parent=39 // pred_region
          %s620 = ssub.s32 128, 128
          %621 = vsyncadd %s612, %s620
          %s622 = smul.addr %s23, 128
          %s623 = scalar_lea.hbm %s5, %s622
          %s625 = sshll.u32 %s615, 4
          %s626 = int_to_ptr.vmem [resolvable:$true] %s625
          %628 = dma.vmem_to_hbm [thread:$0]  %s626, 128, %s623, %s612
        $region52: #{gat_layer_pallas.3} parent=39 // pred_fallthru
          _
      $region40: #{gat_layer_pallas.3} parent=5 // pred_fallthru
        _
      %p629 = scmp.le.s32.totalorder 2, %s14
      // Predicated region
      $region53: #{gat_layer_pallas.3} parent=5 // pred_check
        %p630 = pneg %p629
      $region54: #{gat_layer_pallas.3} parent=5 // pred_check_branch
        %632 = sbr.rel (%p630) target = $region56
      $region55: #{gat_layer_pallas.3} parent=5 // pred_region
        %s633 = ssub.s32 %s14, 2
        // Predicated region
        $region57: #{gat_layer_pallas.3} parent=55 // pred_check
          %p634 = pneg %p191
        $region58: #{gat_layer_pallas.3} parent=55 // pred_check_branch
          %636 = sbr.rel (%p634) target = $region60
        $region59: #{gat_layer_pallas.3} parent=55 // pred_region
          %s637 = sand.u32 %s176, 1
          %s638 = scalar_lea.sflag [#allocation3], %s637
          %s639 = sand.u32 %s176, 1
          %s640 = smul.addr %s639, 8
          %s641 = scalar_lea.vmem [#allocation2], %s640
          %642 = dma.done %s638, 128
        $region60: #{gat_layer_pallas.3} parent=55 // pred_fallthru
          _
      $region56: #{gat_layer_pallas.3} parent=5 // pred_fallthru
        _
    $region6: #{gat_layer_pallas.3} parent=1 // loop_footer
      %s18 = sadd.s32 1, %s14
    $region7: #{gat_layer_pallas.3} parent=1 // loop_footer_branch
      %13 = sbr.rel target = $region3
    $region8: #{gat_layer_pallas.3} parent=1 // loop_exit
      _
    %643 = vsyncpa [#allocation3], 1
    %s644 = scalar_lea.sflag [#allocation3], 1
    %645 = vsyncpa %s644, 1

</llo_original>
